<compile_context>
chip_gen: v5e
topology: v5e:2x2
jax: 0.10.0
libtpu: 0.0.40
codegen_flags: <defaults>
</compile_context>

<pallas_src>
import jax
import jax.numpy as jnp
from jax.experimental import pallas as pl
from jax.experimental.pallas import tpu as pltpu


# ---------------------------------------------------------------------------
# Kernels
# ---------------------------------------------------------------------------
def _cls_kernel(last_ref, out_ref):
    # last_ref: (TB, TS0, H) -- only a small sequence prefix is fetched.
    out_ref[...] = last_ref[:, 0, :].astype(out_ref.dtype)


def _masked_avg_kernel(mask_ref, h_ref, out_ref, acc_ref, msum_ref):
    # mask_ref: (TB, TS, 1), h_ref: (TB, TS, H)
    # out_ref:  (TB, H), acc_ref: (TB, H) f32, msum_ref: (TB, 1) f32
    k = pl.program_id(1)

    @pl.when(k == 0)
    def _init():
        acc_ref[...] = jnp.zeros_like(acc_ref)
        msum_ref[...] = jnp.zeros_like(msum_ref)

    m = mask_ref[...].astype(jnp.float32)          # (TB, TS, 1)
    h = h_ref[...].astype(jnp.float32)             # (TB, TS, H)
    acc_ref[...] += jnp.sum(h * m, axis=1)         # (TB, H)
    msum_ref[...] += jnp.sum(m, axis=1)            # (TB, 1)

    @pl.when(k == pl.num_programs(1) - 1)
    def _fin():
        # Unguarded division, same as the PyTorch reference.
        out_ref[...] = (acc_ref[...] / msum_ref[...]).astype(out_ref.dtype)


def _masked_avg2_kernel(mask_ref, h1_ref, h2_ref, out_ref, acc_ref, msum_ref):
    # Streams both layers tile-by-tile and fuses the add in-kernel (no extra
    # HBM round-trip for (h1+h2)/2).  The 0.5 factor is applied at finalize.
    k = pl.program_id(1)

    @pl.when(k == 0)
    def _init():
        acc_ref[...] = jnp.zeros_like(acc_ref)
        msum_ref[...] = jnp.zeros_like(msum_ref)

    m = mask_ref[...].astype(jnp.float32)                                   # (TB, TS, 1)
    h = h1_ref[...].astype(jnp.float32) + h2_ref[...].astype(jnp.float32)   # (TB, TS, H)
    acc_ref[...] += jnp.sum(h * m, axis=1)                                  # (TB, H)
    msum_ref[...] += jnp.sum(m, axis=1)                                     # (TB, 1)

    @pl.when(k == pl.num_programs(1) - 1)
    def _fin():
        out_ref[...] = ((0.5 * acc_ref[...]) / msum_ref[...]).astype(out_ref.dtype)


# ---------------------------------------------------------------------------
# Tile selection helpers
# ---------------------------------------------------------------------------
def _pick_batch_tile(B):
    # (TB, H) output block: TB must be a multiple of 8 or equal B.
    return 8 if (B >= 8 and B % 8 == 0) else B


def _pick_seq_tile(S, TB, H, itemsize, n_streams,
                   budget_bytes=24 * 1024 * 1024):
    """Largest multiple-of-8 divisor of S whose double-buffered input tiles fit
    a conservative VMEM budget (safe on v7x's 32 MiB scoped default)."""
    per_row = max(1, n_streams * 2 * TB * H * itemsize)   # bytes per seq position
    upper = min(S, max(8, budget_bytes // per_row))
    best = None
    ts = 8
    while ts <= upper:
        if S % ts == 0:
            best = ts
        ts += 8
    return best if best is not None else S   # fallback: single sequence step


# ---------------------------------------------------------------------------
# pallas_call wrappers
# ---------------------------------------------------------------------------
def _cls_pool(last_hidden):
    B, S, H = last_hidden.shape
    TB = _pick_batch_tile(B)
    TS0 = 8 if S >= 8 else S   # sublane-aligned prefix; only row 0 is used
    return pl.pallas_call(
        _cls_kernel,
        out_shape=jax.ShapeDtypeStruct((B, H), last_hidden.dtype),
        grid=(B // TB,),
        in_specs=[pl.BlockSpec((TB, TS0, H), lambda i: (i, 0, 0))],
        out_specs=pl.BlockSpec((TB, H), lambda i: (i, 0)),
        compiler_params=pltpu.CompilerParams(
            dimension_semantics=("parallel",)),
    )(last_hidden)


def _avg_pool(attention_mask, last_hidden):
    B, S, H = last_hidden.shape
    TB = _pick_batch_tile(B)
    TS = _pick_seq_tile(S, TB, H, jnp.dtype(last_hidden.dtype).itemsize,
                        n_streams=1)
    mask3 = attention_mask.astype(jnp.float32).reshape(B, S, 1)
    return pl.pallas_call(
        _masked_avg_kernel,
        out_shape=jax.ShapeDtypeStruct((B, H), last_hidden.dtype),
        grid=(B // TB, S // TS),
        in_specs=[
            pl.BlockSpec((TB, TS, 1), lambda i, k: (i, k, 0)),
            pl.BlockSpec((TB, TS, H), lambda i, k: (i, k, 0)),
        ],
        out_specs=pl.BlockSpec((TB, H), lambda i, k: (i, 0)),
        scratch_shapes=[pltpu.VMEM((TB, H), jnp.float32),
                        pltpu.VMEM((TB, 1), jnp.float32)],
        compiler_params=pltpu.CompilerParams(
            dimension_semantics=("parallel", "arbitrary")),
    )(mask3, last_hidden)


def _avg2_pool(attention_mask, h1, h2):
    B, S, H = h1.shape
    TB = _pick_batch_tile(B)
    TS = _pick_seq_tile(S, TB, H, jnp.dtype(h1.dtype).itemsize, n_streams=2)
    mask3 = attention_mask.astype(jnp.float32).reshape(B, S, 1)
    return pl.pallas_call(
        _masked_avg2_kernel,
        out_shape=jax.ShapeDtypeStruct((B, H), h1.dtype),
        grid=(B // TB, S // TS),
        in_specs=[
            pl.BlockSpec((TB, TS, 1), lambda i, k: (i, k, 0)),
            pl.BlockSpec((TB, TS, H), lambda i, k: (i, k, 0)),
            pl.BlockSpec((TB, TS, H), lambda i, k: (i, k, 0)),
        ],
        out_specs=pl.BlockSpec((TB, H), lambda i, k: (i, 0)),
        scratch_shapes=[pltpu.VMEM((TB, H), jnp.float32),
                        pltpu.VMEM((TB, 1), jnp.float32)],
        compiler_params=pltpu.CompilerParams(
            dimension_semantics=("parallel", "arbitrary")),
    )(mask3, h1, h2)


def pooler_forward(pooler_type, attention_mask, last_hidden_state,
                   hidden_states=None):
    """JAX/Pallas equivalent of Pooler.forward.

    attention_mask:    (B, S)
    last_hidden_state: (B, S, H)
    hidden_states:     tuple of (B, S, H) arrays (HF convention: 0=embeddings,
                       -1=last layer).
    Returns (B, H).
    """
    if pooler_type in ("cls", "cls_before_pooler"):
        # NOTE: for 'cls' the original SimCSE applies BERT's MLP pooler outside
        # this parameter-free module; as in the reference forward we return
        # last_hidden[:, 0].
        return _cls_pool(last_hidden_state)
    elif pooler_type == "avg":
        return _avg_pool(attention_mask, last_hidden_state)
    elif pooler_type == "avg_first_last":
        return _avg2_pool(attention_mask, hidden_states[1], hidden_states[-1])
    elif pooler_type == "avg_top2":
        return _avg2_pool(attention_mask, hidden_states[-1], hidden_states[-2])
    else:
        raise NotImplementedError(pooler_type)


# ---------------------------------------------------------------------------
# Pure-JAX reference (correctness check only)
# ---------------------------------------------------------------------------
def _ref_forward(pooler_type, attention_mask, last_hidden_state, hidden_states):
    m = attention_mask.astype(jnp.float32)
    if pooler_type in ("cls", "cls_before_pooler"):
        return last_hidden_state[:, 0]
    if pooler_type == "avg":
        return (last_hidden_state * m[:, :, None]).sum(1) / m.sum(-1)[:, None]
    if pooler_type == "avg_first_last":
        h = (hidden_states[1] + hidden_states[-1]) / 2.0
        return (h * m[:, :, None]).sum(1) / m.sum(-1)[:, None]
    if pooler_type == "avg_top2":
        h = (hidden_states[-1] + hidden_states[-2]) / 2.0
        return (h * m[:, :, None]).sum(1) / m.sum(-1)[:, None]
    raise NotImplementedError


if __name__ == "__main__":
    B, S, H = 2, 8, 32
    n_layers = 4  # embeddings + 3 transformer layers (HF-style hidden_states)

    key = jax.random.PRNGKey(0)
    keys = jax.random.split(key, n_layers + 1)

    hidden_states = tuple(
        jax.random.normal(keys[i], (B, S, H), dtype=jnp.float32)
        for i in range(n_layers)
    )
    last_hidden_state = hidden_states[-1]

    # deterministic attention mask with some padding (all rows non-empty)
    lengths = jnp.array([S, S - 3], dtype=jnp.int32)
    attention_mask = (jnp.arange(S)[None, :] < lengths[:, None]).astype(jnp.float32)

    all_ok = True
    for pooler_type in ["cls", "cls_before_pooler", "avg",
                        "avg_first_last", "avg_top2"]:
        out = pooler_forward(pooler_type, attention_mask, last_hidden_state,
                             hidden_states)
        out = jax.block_until_ready(out)
        ref = _ref_forward(pooler_type, attention_mask, last_hidden_state,
                           hidden_states)
        if out.shape != (B, H):
            all_ok = False
        if not jnp.allclose(out, ref, atol=1e-5, rtol=1e-5):
            all_ok = False

    if all_ok:
        print("KERNEL_OK")
</pallas_src>

<mosaic_0001>
module attributes {stable_mosaic.version = 11 : i64} {
  func.func @_cls_kernel(%arg0: i32, %arg1: memref<2x8x32xf32, #tpu.memory_space<vmem>>, %arg2: memref<2x32xf32, #tpu.memory_space<vmem>>) attributes {dimension_semantics = [#tpu.dimension_semantics<parallel>], iteration_bounds = array<i64: 1>, scalar_prefetch = 0 : i64, scratch_operands = 0 : i64, tpu.core_type = #tpu.core_type<tc>, window_params = [{transform_indices = @transform_0, window_bounds = array<i64: 2, 8, 32>}, {transform_indices = @transform_1, window_bounds = array<i64: 2, 32>}]} {
    %c0 = arith.constant 0 : index
    %c0_0 = arith.constant 0 : index
    %c0_1 = arith.constant 0 : index
    %0 = vector.load %arg1[%c0, %c0_0, %c0_1] : memref<2x8x32xf32, #tpu.memory_space<vmem>>, vector<2x1x32xf32>
    %1 = vector.shape_cast %0 : vector<2x1x32xf32> to vector<2x32xf32>
    %c0_2 = arith.constant 0 : index
    %c0_3 = arith.constant 0 : index
    %2 = vector.load %arg2[%c0_2, %c0_3] : memref<2x32xf32, #tpu.memory_space<vmem>>, vector<2x32xf32>
    tpu.vector_store %arg2[%c0_2, %c0_3], %1 {strides = array<i32>} : memref<2x32xf32, #tpu.memory_space<vmem>>, vector<2x32xf32>,
    return
  }
  func.func @transform_0(%arg0: i32) -> (i32, i32, i32) {
    %c0_i32 = arith.constant 0 : i32
    %c0_i32_0 = arith.constant 0 : i32
    %c0_i32_1 = arith.constant 0 : i32
    return %arg0, %c0_i32, %c0_i32_0 : i32, i32, i32
  }
  func.func @transform_1(%arg0: i32) -> (i32, i32) {
    %c0_i32 = arith.constant 0 : i32
    %c0_i32_0 = arith.constant 0 : i32
    return %arg0, %c0_i32 : i32, i32
  }
}

</mosaic_0001>

<llo_original>
// kernel: tpu_custom_call.1
$region0: #{tpu_custom_call.1}
  #allocation0 [shape = 'u32[]', space=smem, size = 0x4, offset = 0x4, fixed_abs, tag = 'smem constant byte address 0x4 - core index']
  #allocation1 [shape = 'u32[72,128]{1,0:T(1,128)}', space=vmem, size = 0x9000, scoped, tag = 'internal scratch']
  %s0 = inlined_call_operand.hbm [shape: f32[2,8,32], index: 0, kind: input, shape index: {}]
  %s1 = inlined_call_operand.hbm [shape: f32[2,32], index: 1, kind: output, shape index: {}]
  %s2 = sld [smem:[#allocation0]]
  $region18: #{tpu_custom_call.1} parent=0
    _
  %s4 = ssub.s32 1, %s2
  %s5 = scalar_select 0, %s4, %s2
  $region1: #{tpu_custom_call.1} parent=0
    #allocation2 [shape = 'u8[8192]{0}', space=vmem, size = 0x2000, scoped, tag = 'input window, operand 0, single buffered']
    #allocation3 [shape = 's32[1]{0}', space=sflag, size = 0x4, scoped, tag = 'scoped memory for tpu_custom_call.1']
    #allocation4 [shape = 's32[1]{0}', space=sflag, size = 0x4, scoped, tag = 'scoped memory for tpu_custom_call.1']
    #allocation5 [shape = 'u8[1024]{0}', space=vmem, size = 0x400, scoped, tag = 'output window, operand 0, single buffered']
    %6 = vsyncpa [#allocation3], 0
    %7 = vsyncpa [#allocation4], 0
    // Predicated region
    $region2: #{tpu_custom_call.1} parent=1 // pred_check
      _
    $region3: #{tpu_custom_call.1} parent=1 // pred_check_branch
      %9 = sbr.rel (0) target = $region5
    $region4: #{tpu_custom_call.1} parent=1 // pred_region
      %11 = vsyncadd [#allocation3], 0
      %s12 = sshll.u32 %s0, 4
      %s13 = int_to_ptr.hbm [resolvable:$true] %s12
      %s14 = sshll.u32 [#allocation2], 4
      %s15 = int_to_ptr.vmem [resolvable:$true] %s14
      %20 = dma.hbm_to_vmem [thread:$0]  %s13, 256, %s15, [#allocation3], 128, 128, 8
    $region5: #{tpu_custom_call.1} parent=1 // pred_fallthru
      _
    // Predicated region
    $region6: #{tpu_custom_call.1} parent=1 // pred_check
      _
    $region7: #{tpu_custom_call.1} parent=1 // pred_check_branch
      %22 = sbr.rel (0) target = $region9
    $region8: #{tpu_custom_call.1} parent=1 // pred_region
      %24 = dma.done [#allocation3], 256
    $region9: #{tpu_custom_call.1} parent=1 // pred_fallthru
      _
    %v25 = vld [vmem:[#allocation2] sm:$0x1]
    %v26 = vld [vmem:[#allocation2 + $0x8] sm:$0x1]
    %v29 = vrot.slane %v26, 7
    %vm30 = vcmask 1041409
    %v31 = vsel %vm30, %v29, %v25
    %vm33 = vcmask 254976
    %34 = vst.msk [vmem:[#allocation5] sm:$0x3] %vm33, %v31
    // Predicated region
    $region10: #{tpu_custom_call.1} parent=1 // pred_check
      _
    $region11: #{tpu_custom_call.1} parent=1 // pred_check_branch
      %36 = sbr.rel (0) target = $region13
    $region12: #{tpu_custom_call.1} parent=1 // pred_region
      %38 = vsyncadd [#allocation4], 0
      %s40 = sshll.u32 [#allocation5], 4
      %s41 = int_to_ptr.vmem [resolvable:$true] %s40
      %s42 = sshll.u32 %s1, 4
      %s43 = int_to_ptr.hbm [resolvable:$true] %s42
      %45 = dma.vmem_to_hbm [thread:$0]  %s41, 32, %s43, [#allocation4]
    $region13: #{tpu_custom_call.1} parent=1 // pred_fallthru
      _
    // Predicated region
    $region14: #{tpu_custom_call.1} parent=1 // pred_check
      _
    $region15: #{tpu_custom_call.1} parent=1 // pred_check_branch
      %47 = sbr.rel (0) target = $region17
    $region16: #{tpu_custom_call.1} parent=1 // pred_region
      %49 = dma.done [#allocation4], 32
    $region17: #{tpu_custom_call.1} parent=1 // pred_fallthru
      _
    %50 = vsyncpa [#allocation3], 1
    %51 = vsyncpa [#allocation4], 1

</llo_original>
